<compile_context>
chip_gen: v7x
topology: tpu7x:2x2x1
jax: 0.10.0
libtpu: 0.0.40
codegen_flags: <defaults>
</compile_context>

<pallas_src>
import functools

import jax
import jax.numpy as jnp
from jax.experimental import pallas as pl
from jax.experimental.pallas import tpu as pltpu

LANE = 128
SUBLANE = 8


def _mse_sum_kernel(rows, tile_rows, n_inner, n_full_blocks, need_mask,
                    pred_ref, targ_ref, sum_ref):
    """Accumulate sum((pred - targ)^2) into the resident (1,8,128) f32 output
    block.  Full blocks take a mask-free path; only the partial tail block and
    duplicated (clamped) blocks pay for the iota/select mask."""
    o = pl.program_id(0)
    i = pl.program_id(1)

    @pl.when(i == 0)
    def _():
        sum_ref[...] = jnp.zeros_like(sum_ref)

    d = pred_ref[...].astype(jnp.float32) - targ_ref[...].astype(jnp.float32)
    d2 = d * d

    def _accumulate(x):
        # (tile_rows,128) -> (tile_rows//8, 8, 128); reduce over the leading
        # axis: sequential vreg adds on the VPU, no cross-lane traffic in the
        # hot loop.
        psum = jnp.sum(x.reshape(tile_rows // SUBLANE, SUBLANE, LANE), axis=0)
        sum_ref[...] += psum.reshape(1, SUBLANE, LANE)

    if not need_mask:
        _accumulate(d2)
    else:
        block_idx = o * n_inner + i

        @pl.when(block_idx < n_full_blocks)
        def _():
            _accumulate(d2)

        @pl.when(block_idx >= n_full_blocks)
        def _():
            # Partial tail block and/or duplicated (clamped) blocks: zero rows
            # past the end of the valid slab so OOB garbage (possibly NaN/Inf)
            # or duplicated data never reaches the sum.
            row_ids = block_idx * tile_rows + jax.lax.broadcasted_iota(
                jnp.int32, (tile_rows, LANE), 0)
            _accumulate(jnp.where(row_ids < rows, d2, jnp.float32(0.0)))


def _plain_mse(outputs, labels, factor):
    d = outputs.astype(jnp.float32) - labels.astype(jnp.float32)
    return jnp.mean(d * d) * jnp.float32(factor)


def custom_mse_loss(outputs, labels, inputs=None, *,
                    max_tile_rows=4096, min_pallas_elems=1 << 20):
    """Pallas implementation of CustomMSELoss.forward (`inputs` is unused).

    max_tile_rows is in f32-row units (2 MiB/buffer at 4096); it is scaled by
    4/itemsize for narrower dtypes so the VMEM footprint stays constant.
    """
    del inputs  # unused by the reference module's forward
    assert outputs.shape == labels.shape, "MSELoss requires matching shapes"

    factor = jnp.float32(1.0)            # scaled_loss = base_loss * factor
    total = int(outputs.size)
    if total == 0:
        return jnp.float32(jnp.nan)      # torch mean of an empty tensor

    # Small-input fast path: a one/two-tile problem is launch-overhead bound;
    # XLA's fused reduce is already at roofline there.
    if total < min_pallas_elems:
        return _plain_mse(outputs, labels, 1.0)

    itemsize = int(jnp.dtype(outputs.dtype).itemsize)
    packing = max(1, 4 // itemsize)      # f32:1  bf16:2  int8/fp8:4
    sub = SUBLANE * packing              # dtype-minimal sublane multiple

    flat_o = outputs.reshape(-1)         # contiguous reshape: no copy
    flat_l = labels.reshape(-1)

    # Ragged tail (< 128 elems): tiny plain-JAX sum; never pad the full tensor.
    # (The lane-aligned common case below stays completely copy-free.)
    rem = total % LANE
    bulk = total - rem
    if rem:
        to = jax.lax.slice(flat_o, (bulk,), (total,)).astype(jnp.float32)
        tl = jax.lax.slice(flat_l, (bulk,), (total,)).astype(jnp.float32)
        tail_sum = jnp.sum((to - tl) ** 2)
        flat_o = jax.lax.slice(flat_o, (0,), (bulk,))
        flat_l = jax.lax.slice(flat_l, (0,), (bulk,))
    else:
        tail_sum = jnp.float32(0.0)

    rows = bulk // LANE
    if rows < sub:
        # Degenerate slab (fewer rows than one dtype-minimal tile): skip the
        # kernel entirely rather than risk an odd layout/lowering.
        bulk_sum = jnp.sum((flat_o.astype(jnp.float32)
                            - flat_l.astype(jnp.float32)) ** 2)
        return (bulk_sum + tail_sum) * factor / jnp.float32(total)

    o2 = flat_o.reshape(rows, LANE)
    l2 = flat_l.reshape(rows, LANE)

    def _round_up(x, m):
        return ((x + m - 1) // m) * m

    # Tile sizing: constant 2 MiB/buffer across dtypes; big enough to amortize
    # the ~0.35 us/grid-step overhead, small enough that
    # 2 inputs x 2 buffers x 2 MiB = 8 MiB fits every generation's default
    # scoped VMEM (v5e 16 MiB, v6e/v7x 32 MiB).
    max_rows = max_tile_rows * packing
    tile_rows = min(max_rows, _round_up(rows, sub))
    if tile_rows > rows:                 # never let a block exceed the slab
        tile_rows = (rows // sub) * sub

    n_blocks = pl.cdiv(rows, tile_rows)
    n_full_blocks = rows // tile_rows

    # 2-way outer axis -> both TensorCores stream on v7x (sequential, harmless
    # on single-TC v5e/v6e).  Avoid it when it would force a wasted
    # duplicated-block DMA on small/odd block counts.
    if n_blocks >= 2 and n_blocks % 2 == 0:
        n_outer = 2
    elif n_blocks >= 9:                  # waste <= 1 tile out of >= 9
        n_outer = 2
    else:
        n_outer = 1
    n_inner = pl.cdiv(n_blocks, n_outer)

    need_mask = (rows % tile_rows != 0) or (n_outer * n_inner != n_blocks)

    def data_map(o, i):
        # Clamp so a DMA never targets a block starting fully out of bounds;
        # the in-kernel mask zeroes any duplicated contribution.
        return (jnp.minimum(o * n_inner + i, n_blocks - 1), 0)

    # Only raise the scoped-VMEM limit when a user-enlarged tile needs it
    # (e.g. 8192 f32 rows on v7x); the default tile fits every default limit.
    tile_bytes = tile_rows * LANE * itemsize
    vmem_need = 4 * tile_bytes + (1 << 20)   # 2 inputs x 2 buffers + slack
    compiler_kwargs = {}
    if vmem_need > (14 << 20):
        compiler_kwargs["vmem_limit_bytes"] = int(vmem_need + (2 << 20))

    partials = pl.pallas_call(
        functools.partial(_mse_sum_kernel, rows, tile_rows, n_inner,
                          n_full_blocks, need_mask),
        out_shape=jax.ShapeDtypeStruct((n_outer, SUBLANE, LANE), jnp.float32),
        grid_spec=pltpu.PrefetchScalarGridSpec(
            num_scalar_prefetch=0,
            grid=(n_outer, n_inner),
            in_specs=[
                pl.BlockSpec((tile_rows, LANE), data_map),
                pl.BlockSpec((tile_rows, LANE), data_map),
            ],
            out_specs=pl.BlockSpec((1, SUBLANE, LANE),
                                   lambda o, i: (o, 0, 0)),
        ),
        compiler_params=pltpu.CompilerParams(
            dimension_semantics=("parallel", "arbitrary"),
            **compiler_kwargs,
        ),
        cost_estimate=pl.CostEstimate(
            flops=3 * total,
            transcendentals=0,
            bytes_accessed=2 * total * itemsize,
        ),
    )(o2, l2)

    # Final tiny cross-lane reduce (n_outer x 8 x 128 elems) in plain JAX.
    return (jnp.sum(partials) + tail_sum) * factor / jnp.float32(total)


if __name__ == "__main__":
    key = jax.random.PRNGKey(0)
    k_out, k_lab, k_in = jax.random.split(key, 3)

    # Small NCHW-shaped tensors consistent with a conv-net regression target.
    shape = (2, 4, 16, 16)
    outputs = jax.random.normal(k_out, shape, dtype=jnp.float32)
    labels = jax.random.normal(k_lab, shape, dtype=jnp.float32)
    inputs = jax.random.normal(k_in, shape, dtype=jnp.float32)  # unused, as in the module

    # min_pallas_elems=0 forces the Pallas path even at this small demo size
    # (the default keeps tiny inputs on XLA's fused reduce, where it's faster).
    loss = custom_mse_loss(outputs, labels, inputs, min_pallas_elems=0)
    loss = jax.block_until_ready(loss)

    ref = jnp.mean((outputs - labels) ** 2)
    assert jnp.allclose(loss, ref, rtol=1e-5, atol=1e-6), (loss, ref)

    # Non-lane-aligned, multi-block case: exercises the masked tail block, the
    # duplicated-block zeroing, and the ragged <128-element plain-JAX tail.
    shape2 = (4, 8, 33, 65)
    o_big = jax.random.normal(k_out, shape2, dtype=jnp.float32)
    l_big = jax.random.normal(k_lab, shape2, dtype=jnp.float32)
    loss2 = jax.block_until_ready(
        custom_mse_loss(o_big, l_big, None, max_tile_rows=64,
                        min_pallas_elems=0))
    ref2 = jnp.mean((o_big - l_big) ** 2)
    assert jnp.allclose(loss2, ref2, rtol=1e-5, atol=1e-6), (loss2, ref2)

    # bf16 streaming path (tile rows scale by 2, rounded to a multiple of 16).
    shape3 = (2, 4, 32, 128)
    o_bf = jax.random.normal(k_out, shape3, dtype=jnp.bfloat16)
    l_bf = jax.random.normal(k_lab, shape3, dtype=jnp.bfloat16)
    loss3 = jax.block_until_ready(
        custom_mse_loss(o_bf, l_bf, None, min_pallas_elems=0))
    ref3 = jnp.mean((o_bf.astype(jnp.float32) - l_bf.astype(jnp.float32)) ** 2)
    assert jnp.allclose(loss3, ref3, rtol=1e-5, atol=1e-6), (loss3, ref3)

    print("KERNEL_OK")
</pallas_src>

<mosaic_0001>
module attributes {stable_mosaic.version = 11 : i64} {
  func.func @_mse_sum_kernel(%arg0: i32, %arg1: i32, %arg2: memref<16x128xf32, #tpu.memory_space<vmem>>, %arg3: memref<16x128xf32, #tpu.memory_space<vmem>>, %arg4: memref<1x8x128xf32, #tpu.memory_space<vmem>>) attributes {dimension_semantics = [#tpu.dimension_semantics<parallel>, #tpu.dimension_semantics<arbitrary>], iteration_bounds = array<i64: 1, 1>, scalar_prefetch = 0 : i64, scratch_operands = 0 : i64, tpu.core_type = #tpu.core_type<tc>, window_params = [{transform_indices = @transform_0, window_bounds = array<i64: 16, 128>}, {transform_indices = @transform_1, window_bounds = array<i64: 16, 128>}, {transform_indices = @transform_2, window_bounds = array<i64: 1, 8, 128>}]} {
    %c0_i32 = arith.constant 0 : i32
    %0 = arith.cmpi eq, %arg1, %c0_i32 : i32
    %1 = arith.extui %0 : i1 to i32
    %c0_i32_0 = arith.constant 0 : i32
    %2 = arith.cmpi ne, %1, %c0_i32_0 : i32
    scf.if %2 {
      %cst_10 = arith.constant 0.000000e+00 : f32
      %13 = vector.broadcast %cst_10 : f32 to vector<1x8x128xf32>
      %c0_11 = arith.constant 0 : index
      %c0_12 = arith.constant 0 : index
      %c0_13 = arith.constant 0 : index
      %14 = vector.load %arg4[%c0_11, %c0_12, %c0_13] : memref<1x8x128xf32, #tpu.memory_space<vmem>>, vector<1x8x128xf32>
      tpu.vector_store %arg4[%c0_11, %c0_12, %c0_13], %13 {strides = array<i32>} : memref<1x8x128xf32, #tpu.memory_space<vmem>>, vector<1x8x128xf32>,
    } else {
    }
    %c0 = arith.constant 0 : index
    %c0_1 = arith.constant 0 : index
    %3 = vector.load %arg2[%c0, %c0_1] : memref<16x128xf32, #tpu.memory_space<vmem>>, vector<16x128xf32>
    %c0_2 = arith.constant 0 : index
    %c0_3 = arith.constant 0 : index
    %4 = vector.load %arg3[%c0_2, %c0_3] : memref<16x128xf32, #tpu.memory_space<vmem>>, vector<16x128xf32>
    %5 = arith.subf %3, %4 : vector<16x128xf32>
    %6 = arith.mulf %5, %5 : vector<16x128xf32>
    %7 = vector.shape_cast %6 : vector<16x128xf32> to vector<2x8x128xf32>
    %cst = arith.constant dense<0.000000e+00> : vector<8x128xf32>
    %8 = vector.multi_reduction <add>, %7, %cst [0] : vector<2x8x128xf32> to vector<8x128xf32>
    %c0_4 = arith.constant 0 : index
    %c0_5 = arith.constant 0 : index
    %c0_6 = arith.constant 0 : index
    %9 = vector.load %arg4[%c0_4, %c0_5, %c0_6] : memref<1x8x128xf32, #tpu.memory_space<vmem>>, vector<1x8x128xf32>
    %10 = vector.shape_cast %8 : vector<8x128xf32> to vector<1x8x128xf32>
    %11 = arith.addf %9, %10 : vector<1x8x128xf32>
    %c0_7 = arith.constant 0 : index
    %c0_8 = arith.constant 0 : index
    %c0_9 = arith.constant 0 : index
    %12 = vector.load %arg4[%c0_7, %c0_8, %c0_9] : memref<1x8x128xf32, #tpu.memory_space<vmem>>, vector<1x8x128xf32>
    tpu.vector_store %arg4[%c0_7, %c0_8, %c0_9], %11 {strides = array<i32>} : memref<1x8x128xf32, #tpu.memory_space<vmem>>, vector<1x8x128xf32>,
    return
  }
  func.func @transform_0(%arg0: i32, %arg1: i32) -> (i32, i32) {
    %c1_i32 = arith.constant 1 : i32
    %0 = arith.muli %arg0, %c1_i32 : i32
    %1 = arith.addi %0, %arg1 : i32
    %c0_i32 = arith.constant 0 : i32
    %2 = arith.minsi %1, %c0_i32 : i32
    %c0_i32_0 = arith.constant 0 : i32
    %c0_i32_1 = arith.constant 0 : i32
    return %2, %c0_i32_0 : i32, i32
  }
  func.func @transform_1(%arg0: i32, %arg1: i32) -> (i32, i32) {
    %c1_i32 = arith.constant 1 : i32
    %0 = arith.muli %arg0, %c1_i32 : i32
    %1 = arith.addi %0, %arg1 : i32
    %c0_i32 = arith.constant 0 : i32
    %2 = arith.minsi %1, %c0_i32 : i32
    %c0_i32_0 = arith.constant 0 : i32
    %c0_i32_1 = arith.constant 0 : i32
    return %2, %c0_i32_0 : i32, i32
  }
  func.func @transform_2(%arg0: i32, %arg1: i32) -> (i32, i32, i32) {
    %c0_i32 = arith.constant 0 : i32
    %c0_i32_0 = arith.constant 0 : i32
    %c0_i32_1 = arith.constant 0 : i32
    return %arg0, %c0_i32, %c0_i32_0 : i32, i32, i32
  }
}

</mosaic_0001>

<llo_original>
// kernel: tpu_custom_call.1
$region0: #{tpu_custom_call.1}
  #allocation0 [shape = 'u32[]', space=smem, size = 0x4, offset = 0x4, fixed_abs, tag = 'smem constant byte address 0x4 - core index']
  #allocation1 [shape = 'u32[144,128]{1,0:T(1,128)}', space=vmem, size = 0x12000, scoped, tag = 'internal scratch']
  %s0 = inlined_call_operand.hbm [shape: f32[16,128], index: 0, kind: input, shape index: {}]
  %s1 = inlined_call_operand.hbm [shape: f32[16,128], index: 1, kind: input, shape index: {}]
  %s2 = inlined_call_operand.hbm [shape: f32[1,8,128], index: 2, kind: output, shape index: {}]
  %s3 = sld [smem:[#allocation0]]
  $region30: #{tpu_custom_call.1} parent=0
    _
  %s5 = ssub.s32 1, %s3
  %s6 = scalar_select 0, %s5, %s3
  $region1: #{tpu_custom_call.1} parent=0
    #allocation2 [shape = 'u8[8192]{0}', space=vmem, size = 0x2000, scoped, tag = 'input window, operand 0, single buffered']
    #allocation3 [shape = 's32[1]{0}', space=sflag, size = 0x4, scoped, tag = 'scoped memory for tpu_custom_call.1']
    #allocation4 [shape = 's32[1]{0}', space=sflag, size = 0x4, scoped, tag = 'scoped memory for tpu_custom_call.1']
    #allocation5 [shape = 'u8[8192]{0}', space=vmem, size = 0x2000, scoped, tag = 'input window, operand 1, single buffered']
    #allocation6 [shape = 's32[1]{0}', space=sflag, size = 0x4, scoped, tag = 'scoped memory for tpu_custom_call.1']
    #allocation7 [shape = 'u8[4096]{0}', space=vmem, size = 0x1000, scoped, tag = 'output window, operand 0, single buffered']
    %7 = vsyncpa [#allocation3], 0
    %8 = vsyncpa [#allocation6], 0
    %9 = vsyncpa [#allocation4], 0
    // Predicated region
    $region2: #{tpu_custom_call.1} parent=1 // pred_check
      _
    $region3: #{tpu_custom_call.1} parent=1 // pred_check_branch
      %11 = sbr.rel (0) target = $region5
    $region4: #{tpu_custom_call.1} parent=1 // pred_region
      %s12 = sadd.s32 0, 0
      %p13 = scmp.lt.s32.totalorder %s12, 0
      %s14 = scalar_select %p13, %s12, 0
      %s15 = smul.u32 2, %s14
      %s17 = ssub.s32 256, 256
      %18 = vsyncadd [#allocation3], %s17
      %s19 = smul.addr %s15, 128
      %s20 = scalar_lea.hbm %s0, %s19
      %s21 = sshll.u32 [#allocation2], 4
      %s22 = int_to_ptr.vmem [resolvable:$true] %s21
      %27 = dma.hbm_to_vmem [thread:$0]  %s20, 256, %s22, [#allocation3], 128, 128, 8
    $region5: #{tpu_custom_call.1} parent=1 // pred_fallthru
      _
    // Predicated region
    $region6: #{tpu_custom_call.1} parent=1 // pred_check
      _
    $region7: #{tpu_custom_call.1} parent=1 // pred_check_branch
      %29 = sbr.rel (0) target = $region9
    $region8: #{tpu_custom_call.1} parent=1 // pred_region
      %s30 = sadd.s32 0, 0
      %p31 = scmp.lt.s32.totalorder %s30, 0
      %s32 = scalar_select %p31, %s30, 0
      %s33 = smul.u32 2, %s32
      %s35 = ssub.s32 256, 256
      %36 = vsyncadd [#allocation6], %s35
      %s37 = smul.addr %s33, 128
      %s38 = scalar_lea.hbm %s1, %s37
      %s39 = sshll.u32 [#allocation5], 4
      %s40 = int_to_ptr.vmem [resolvable:$true] %s39
      %45 = dma.hbm_to_vmem [thread:$0]  %s38, 256, %s40, [#allocation6], 128, 128, 8
    $region9: #{tpu_custom_call.1} parent=1 // pred_fallthru
      _
    // Predicated region
    $region10: #{tpu_custom_call.1} parent=1 // pred_check
      _
    $region11: #{tpu_custom_call.1} parent=1 // pred_check_branch
      %47 = sbr.rel (0) target = $region13
    $region12: #{tpu_custom_call.1} parent=1 // pred_region
      %48 = dma.done [#allocation3], 256
    $region13: #{tpu_custom_call.1} parent=1 // pred_fallthru
      _
    // Predicated region
    $region14: #{tpu_custom_call.1} parent=1 // pred_check
      _
    $region15: #{tpu_custom_call.1} parent=1 // pred_check_branch
      %50 = sbr.rel (0) target = $region17
    $region16: #{tpu_custom_call.1} parent=1 // pred_region
      %51 = dma.done [#allocation6], 256
    $region17: #{tpu_custom_call.1} parent=1 // pred_fallthru
      _
    %s52 = sadd.s32 0, 0
    %p53 = scmp.lt.s32.totalorder %s52, 0
    %s54 = scalar_select %p53, %s52, 0
    %s55 = smul.u32 2, %s54
    %s56 = sadd.s32 0, 0
    %p57 = scmp.lt.s32.totalorder %s56, 0
    %s58 = scalar_select %p57, %s56, 0
    %s59 = smul.u32 2, %s58
    %p60 = scmp.eq.s32.totalorder 0, 0
    // Predicated region
    $region18: #{tpu_custom_call.1} parent=1 // pred_check
      %p61 = pneg %p60
    $region19: #{tpu_custom_call.1} parent=1 // pred_check_branch
      %63 = sbr.rel (%p61) target = $region21
    $region20: #{tpu_custom_call.1} parent=1 // pred_region
      %64 = vst [vmem:[#allocation7] sm:$0xff] 0.0
    $region21: #{tpu_custom_call.1} parent=1 // pred_fallthru
      _
    %v65 = vld [vmem:[#allocation2] sm:$0xff]
    %v66 = vld [vmem:[#allocation2 + $0x8] sm:$0xff]
    %v67 = vld [vmem:[#allocation5] sm:$0xff]
    %v68 = vld [vmem:[#allocation5 + $0x8] sm:$0xff]
    %v69 = vsub.f32 %v65, %v67
    %v70 = vsub.f32 %v66, %v68
    %v71 = vmul.f32 %v69, %v69
    %v72 = vmul.f32 %v70, %v70
    %v73 = vadd.f32 %v71, %v72
    %v74 = vld [vmem:[#allocation7] sm:$0xff]
    %v75 = vadd.f32 %v74, %v73
    %76 = vst [vmem:[#allocation7] sm:$0xff] %v75
    // Predicated region
    $region22: #{tpu_custom_call.1} parent=1 // pred_check
      _
    $region23: #{tpu_custom_call.1} parent=1 // pred_check_branch
      %78 = sbr.rel (0) target = $region25
    $region24: #{tpu_custom_call.1} parent=1 // pred_region
      %s80 = ssub.s32 128, 128
      %81 = vsyncadd [#allocation4], %s80
      %s83 = sshll.u32 [#allocation7], 4
      %s84 = int_to_ptr.vmem [resolvable:$true] %s83
      %86 = dma.vmem_to_hbm [thread:$0]  %s84, 128, %s2, [#allocation4]
    $region25: #{tpu_custom_call.1} parent=1 // pred_fallthru
      _
    // Predicated region
    $region26: #{tpu_custom_call.1} parent=1 // pred_check
      _
    $region27: #{tpu_custom_call.1} parent=1 // pred_check_branch
      %88 = sbr.rel (0) target = $region29
    $region28: #{tpu_custom_call.1} parent=1 // pred_region
      %89 = dma.done [#allocation4], 128
    $region29: #{tpu_custom_call.1} parent=1 // pred_fallthru
      _
    %90 = vsyncpa [#allocation3], 1
    %91 = vsyncpa [#allocation6], 1
    %92 = vsyncpa [#allocation4], 1

</llo_original>
